<compile_context>
chip_gen: v7x
topology: tpu7x:2x2x1
jax: 0.10.0
libtpu: 0.0.40
codegen_flags: <defaults>
</compile_context>

<pallas_src>
import jax
import jax.numpy as jnp
from jax.experimental import pallas as pl
from jax.experimental.pallas import tpu as pltpu
from itertools import chain


# ---------------------------------------------------------------------------
# Pallas kernel: whole-array HBM -> HBM copy (explicit materialization only).
# ---------------------------------------------------------------------------
def _hbm_copy_kernel(x_hbm_ref, o_hbm_ref, copy_sem):
    # Single DMA of the entire array between HBM buffers: no VMEM staging,
    # no grid, no per-step overhead. The DMA engine saturates HBM on its own,
    # so there is nothing to shard across TensorCores for this mem-bound op.
    cp = pltpu.make_async_copy(x_hbm_ref, o_hbm_ref, copy_sem)
    cp.start()
    cp.wait()


def region_materialize_pallas(x):
    """Copy `x` into a genuinely NEW HBM buffer via one HBM->HBM DMA.

    No input_output_aliases: the output is a fresh allocation, so this really
    is a materialization / fusion boundary (unlike the previous aliased
    version, which re-wrote the same buffer and wasted 2x x.nbytes of HBM
    traffic). Both refs stay in HBM (memory_space=pl.ANY), so the copy is a
    pure DMA with no VMEM tiling to tune per TPU generation.
    """
    return pl.pallas_call(
        _hbm_copy_kernel,
        in_specs=[pl.BlockSpec(memory_space=pl.ANY)],
        out_specs=pl.BlockSpec(memory_space=pl.ANY),
        out_shape=jax.ShapeDtypeStruct(x.shape, x.dtype),
        scratch_shapes=[pltpu.SemaphoreType.DMA],
    )(x)


# ---------------------------------------------------------------------------
# Forward pass (matches REGIONLayer.forward semantics).
# ---------------------------------------------------------------------------
def region_layer_forward(x, img_size, *, materialize=False):
    """REGIONLayer.forward: stride = img_size // H (floor), output = x.

    Default: no pallas_call runs (identity hot path, stride is host-static).
    materialize=True routes the feature map through a single HBM->HBM DMA
    copy, producing a new buffer (explicit materialization boundary).
    """
    stride = img_size // x.shape[2]  # static, shape-derived; no device round-trip
    if materialize:
        x = region_materialize_pallas(x)
    return x, stride


class REGIONLayerPallas:
    """JAX/Pallas mirror of the PyTorch REGIONLayer module."""

    def __init__(self, anchors, num_classes):
        self.num_anchors = len(anchors)
        self.num_classes = num_classes
        self.no = num_classes + 5
        self.grid = jnp.zeros((1,), dtype=jnp.float32)
        anchors_flat = jnp.asarray(list(chain(*anchors)), dtype=jnp.float32).reshape(-1, 2)
        self.anchors = anchors_flat
        self.anchor_grid = anchors_flat.reshape(1, -1, 1, 1, 2)
        self.stride = None
        # TODO(synk): mse_loss / bce_loss are training-time members unused in
        # forward; no Pallas equivalent is needed for the forward pass.

    def __call__(self, x, img_size, *, materialize=False):
        x_out, stride = region_layer_forward(x, img_size, materialize=materialize)
        self.stride = stride
        return x_out

    @staticmethod
    def _make_grid(nx=20, ny=20):
        # Pure-JAX glue (not a hot path; matches torch meshgrid 'ij' default).
        yv, xv = jnp.meshgrid(jnp.arange(ny), jnp.arange(nx), indexing="ij")
        return jnp.stack((xv, yv), axis=2).reshape(1, 1, ny, nx, 2).astype(jnp.float32)


if __name__ == "__main__":
    # 3 anchors, 4 classes -> channels = 3 * (4 + 5) = 27; spatial 16x16; batch 2.
    anchors = [(10.0, 14.0), (23.0, 27.0), (37.0, 58.0)]
    num_classes = 4
    B, H, W = 2, 16, 16
    C = len(anchors) * (num_classes + 5)  # 27
    img_size = 64  # -> stride = 64 // 16 = 4

    key = jax.random.PRNGKey(0)
    x = jax.random.normal(key, (B, C, H, W), dtype=jnp.float32)

    layer = REGIONLayerPallas(anchors, num_classes)

    # Default path: zero-copy identity + static stride (recommended).
    y_fast = layer(x, img_size)
    assert y_fast is x
    assert layer.stride == img_size // H

    # Optional Pallas materialization (single HBM->HBM DMA into a NEW buffer;
    # no aliasing, so x remains valid and comparable afterwards).
    y_mat = layer(x, img_size, materialize=True)
    y_mat = jax.block_until_ready(y_mat)

    assert y_mat.shape == x.shape and y_mat.dtype == x.dtype
    assert bool(jnp.all(y_mat == x))
    assert layer.stride == img_size // H

    # Buffer-registration glue sanity check (matches torch _make_grid shape).
    g = REGIONLayerPallas._make_grid(4, 3)
    assert g.shape == (1, 1, 3, 4, 2)

    print("KERNEL_OK")
</pallas_src>

<mosaic_0001>
module attributes {stable_mosaic.version = 11 : i64} {
  func.func @_hbm_copy_kernel(%arg0: memref<2x27x16x16xf32, #tpu.memory_space<any>>, %arg1: memref<2x27x16x16xf32, #tpu.memory_space<any>>, %arg2: memref<!tpu.dma_semaphore, #tpu.memory_space<semaphore_mem>>) attributes {dimension_semantics = [], scalar_prefetch = 0 : i64, scratch_operands = 1 : i64, tpu.core_type = #tpu.core_type<tc>} {
    tpu.enqueue_dma source(%arg0 : memref<2x27x16x16xf32, #tpu.memory_space<any>>) target(%arg1 : memref<2x27x16x16xf32, #tpu.memory_space<any>>) target_semaphore(%arg2 : memref<!tpu.dma_semaphore, #tpu.memory_space<semaphore_mem>>)
    tpu.wait_dma2 semaphore(%arg2 : memref<!tpu.dma_semaphore, #tpu.memory_space<semaphore_mem>>) src(%arg0 : memref<2x27x16x16xf32, #tpu.memory_space<any>>) dst(%arg1 : memref<2x27x16x16xf32, #tpu.memory_space<any>>)
    return
  }
}

</mosaic_0001>

<llo_original>
// kernel: tpu_custom_call.1
$region0: #{tpu_custom_call.1}
  #allocation0 [shape = 'u32[]', space=smem, size = 0x4, offset = 0x4, fixed_abs, tag = 'smem constant byte address 0x4 - core index']
  #allocation1 [shape = 'u32[144,128]{1,0:T(1,128)}', space=vmem, size = 0x12000, scoped, tag = 'internal scratch']
  #allocation2 [shape = 's32[1]{0}', space=sflag, size = 0x4, scoped, tag = 'scratch operand']
  #allocation3 [shape = 's32[]', space=sflag, size = 0x4, offset = 0, fixed_abs, tag = 'sflag constant byte address 0x0 - dummy sync flag']
  %s0 = inlined_call_operand.vmem [shape: f32[2,27,16,16], index: 0, kind: input, shape index: {}]
  %s1 = inlined_call_operand.vmem [shape: f32[2,27,16,16], index: 1, kind: output, shape index: {}]
  %s2 = sld [smem:[#allocation0]]
  $region36: #{tpu_custom_call.1} parent=0
    _
  %s4 = ssub.s32 1, %s2
  %s5 = scalar_select 0, %s4, %s2
  %p7 = scmp.lt.u32.totalorder 864, 8
  %p8 = pneg %p7
  // Predicated region
  $region2: #{tpu_custom_call.1} parent=0 // pred_check
    _
  $region3: #{tpu_custom_call.1} parent=0 // pred_check_branch
    %10 = sbr.rel (%p7) target = $region5
  $region4: #{tpu_custom_call.1} parent=0 // pred_region
    %s25 = sand.u32 864, 7
    %p26 = scmp.eq.s32.totalorder %s25, 0
    // Predicated region
    $region17: #{tpu_custom_call.1} parent=4 // pred_check
      %p27 = pneg %p26
    $region18: #{tpu_custom_call.1} parent=4 // pred_check_branch
      %29 = sbr.rel (%p27) target = $region20
    $region19: #{tpu_custom_call.1} parent=4 // pred_region
      loop: start=0, step=1, limit=1
      $region21: #{tpu_custom_call.1} parent=19 // loop_pre_header
        _
      $region22: #{tpu_custom_call.1} parent=19 // loop_header
        %s31 = sphi 0, %s35
        %p32 = scmp.ge.s32.totalorder %s31, 1
        %s36 = sphi %s0, %s0
        %s37 = sphi %s1, %s1
      $region23: #{tpu_custom_call.1} parent=19 // loop_header_branch
        %34 = sbr.rel (%p32) target = $region27
      $region24: #{tpu_custom_call.1} parent=19 // loop_body
        %v38 = vld [vmem:[%s36] sm:$0xff]
        %39 = vst [vmem:[%s37] sm:$0xff] %v38
        %v40 = vld [vmem:[%s36 + $0x8] sm:$0xff]
        %41 = vst [vmem:[%s37 + $0x8] sm:$0xff] %v40
        %v42 = vld [vmem:[%s36 + $0x10] sm:$0xff]
        %43 = vst [vmem:[%s37 + $0x10] sm:$0xff] %v42
        %v44 = vld [vmem:[%s36 + $0x18] sm:$0xff]
        %45 = vst [vmem:[%s37 + $0x18] sm:$0xff] %v44
        %v46 = vld [vmem:[%s36 + $0x20] sm:$0xff]
        %47 = vst [vmem:[%s37 + $0x20] sm:$0xff] %v46
        %v48 = vld [vmem:[%s36 + $0x28] sm:$0xff]
        %49 = vst [vmem:[%s37 + $0x28] sm:$0xff] %v48
        %v50 = vld [vmem:[%s36 + $0x30] sm:$0xff]
        %51 = vst [vmem:[%s37 + $0x30] sm:$0xff] %v50
        %v52 = vld [vmem:[%s36 + $0x38] sm:$0xff]
        %53 = vst [vmem:[%s37 + $0x38] sm:$0xff] %v52
        %v54 = vld [vmem:[%s36 + $0x40] sm:$0xff]
        %55 = vst [vmem:[%s37 + $0x40] sm:$0xff] %v54
        %v56 = vld [vmem:[%s36 + $0x48] sm:$0xff]
        %57 = vst [vmem:[%s37 + $0x48] sm:$0xff] %v56
        %v58 = vld [vmem:[%s36 + $0x50] sm:$0xff]
        %59 = vst [vmem:[%s37 + $0x50] sm:$0xff] %v58
        %v60 = vld [vmem:[%s36 + $0x58] sm:$0xff]
        %61 = vst [vmem:[%s37 + $0x58] sm:$0xff] %v60
        %v62 = vld [vmem:[%s36 + $0x60] sm:$0xff]
        %63 = vst [vmem:[%s37 + $0x60] sm:$0xff] %v62
        %v64 = vld [vmem:[%s36 + $0x68] sm:$0xff]
        %65 = vst [vmem:[%s37 + $0x68] sm:$0xff] %v64
        %v66 = vld [vmem:[%s36 + $0x70] sm:$0xff]
        %67 = vst [vmem:[%s37 + $0x70] sm:$0xff] %v66
        %v68 = vld [vmem:[%s36 + $0x78] sm:$0xff]
        %69 = vst [vmem:[%s37 + $0x78] sm:$0xff] %v68
        %v70 = vld [vmem:[%s36 + $0x80] sm:$0xff]
        %71 = vst [vmem:[%s37 + $0x80] sm:$0xff] %v70
        %v72 = vld [vmem:[%s36 + $0x88] sm:$0xff]
        %73 = vst [vmem:[%s37 + $0x88] sm:$0xff] %v72
        %v74 = vld [vmem:[%s36 + $0x90] sm:$0xff]
        %75 = vst [vmem:[%s37 + $0x90] sm:$0xff] %v74
        %v76 = vld [vmem:[%s36 + $0x98] sm:$0xff]
        %77 = vst [vmem:[%s37 + $0x98] sm:$0xff] %v76
        %v78 = vld [vmem:[%s36 + $0xa0] sm:$0xff]
        %79 = vst [vmem:[%s37 + $0xa0] sm:$0xff] %v78
        %v80 = vld [vmem:[%s36 + $0xa8] sm:$0xff]
        %81 = vst [vmem:[%s37 + $0xa8] sm:$0xff] %v80
        %v82 = vld [vmem:[%s36 + $0xb0] sm:$0xff]
        %83 = vst [vmem:[%s37 + $0xb0] sm:$0xff] %v82
        %v84 = vld [vmem:[%s36 + $0xb8] sm:$0xff]
        %85 = vst [vmem:[%s37 + $0xb8] sm:$0xff] %v84
        %v86 = vld [vmem:[%s36 + $0xc0] sm:$0xff]
        %87 = vst [vmem:[%s37 + $0xc0] sm:$0xff] %v86
        %v88 = vld [vmem:[%s36 + $0xc8] sm:$0xff]
        %89 = vst [vmem:[%s37 + $0xc8] sm:$0xff] %v88
        %v90 = vld [vmem:[%s36 + $0xd0] sm:$0xff]
        %91 = vst [vmem:[%s37 + $0xd0] sm:$0xff] %v90
        %v92 = vld [vmem:[%s36 + $0xd8] sm:$0xff]
        %93 = vst [vmem:[%s37 + $0xd8] sm:$0xff] %v92
        %v94 = vld [vmem:[%s36 + $0xe0] sm:$0xff]
        %95 = vst [vmem:[%s37 + $0xe0] sm:$0xff] %v94
        %v96 = vld [vmem:[%s36 + $0xe8] sm:$0xff]
        %97 = vst [vmem:[%s37 + $0xe8] sm:$0xff] %v96
        %v98 = vld [vmem:[%s36 + $0xf0] sm:$0xff]
        %99 = vst [vmem:[%s37 + $0xf0] sm:$0xff] %v98
        %v100 = vld [vmem:[%s36 + $0xf8] sm:$0xff]
        %101 = vst [vmem:[%s37 + $0xf8] sm:$0xff] %v100
        %v102 = vld [vmem:[%s36 + $0x100] sm:$0xff]
        %103 = vst [vmem:[%s37 + $0x100] sm:$0xff] %v102
        %v104 = vld [vmem:[%s36 + $0x108] sm:$0xff]
        %105 = vst [vmem:[%s37 + $0x108] sm:$0xff] %v104
        %v106 = vld [vmem:[%s36 + $0x110] sm:$0xff]
        %107 = vst [vmem:[%s37 + $0x110] sm:$0xff] %v106
        %v108 = vld [vmem:[%s36 + $0x118] sm:$0xff]
        %109 = vst [vmem:[%s37 + $0x118] sm:$0xff] %v108
        %v110 = vld [vmem:[%s36 + $0x120] sm:$0xff]
        %111 = vst [vmem:[%s37 + $0x120] sm:$0xff] %v110
        %v112 = vld [vmem:[%s36 + $0x128] sm:$0xff]
        %113 = vst [vmem:[%s37 + $0x128] sm:$0xff] %v112
        %v114 = vld [vmem:[%s36 + $0x130] sm:$0xff]
        %115 = vst [vmem:[%s37 + $0x130] sm:$0xff] %v114
        %v116 = vld [vmem:[%s36 + $0x138] sm:$0xff]
        %117 = vst [vmem:[%s37 + $0x138] sm:$0xff] %v116
        %v118 = vld [vmem:[%s36 + $0x140] sm:$0xff]
        %119 = vst [vmem:[%s37 + $0x140] sm:$0xff] %v118
        %v120 = vld [vmem:[%s36 + $0x148] sm:$0xff]
        %121 = vst [vmem:[%s37 + $0x148] sm:$0xff] %v120
        %v122 = vld [vmem:[%s36 + $0x150] sm:$0xff]
        %123 = vst [vmem:[%s37 + $0x150] sm:$0xff] %v122
        %v124 = vld [vmem:[%s36 + $0x158] sm:$0xff]
        %125 = vst [vmem:[%s37 + $0x158] sm:$0xff] %v124
        %v126 = vld [vmem:[%s36 + $0x160] sm:$0xff]
        %127 = vst [vmem:[%s37 + $0x160] sm:$0xff] %v126
        %v128 = vld [vmem:[%s36 + $0x168] sm:$0xff]
        %129 = vst [vmem:[%s37 + $0x168] sm:$0xff] %v128
        %v130 = vld [vmem:[%s36 + $0x170] sm:$0xff]
        %131 = vst [vmem:[%s37 + $0x170] sm:$0xff] %v130
        %v132 = vld [vmem:[%s36 + $0x178] sm:$0xff]
        %133 = vst [vmem:[%s37 + $0x178] sm:$0xff] %v132
        %v134 = vld [vmem:[%s36 + $0x180] sm:$0xff]
        %135 = vst [vmem:[%s37 + $0x180] sm:$0xff] %v134
        %v136 = vld [vmem:[%s36 + $0x188] sm:$0xff]
        %137 = vst [vmem:[%s37 + $0x188] sm:$0xff] %v136
        %v138 = vld [vmem:[%s36 + $0x190] sm:$0xff]
        %139 = vst [vmem:[%s37 + $0x190] sm:$0xff] %v138
        %v140 = vld [vmem:[%s36 + $0x198] sm:$0xff]
        %141 = vst [vmem:[%s37 + $0x198] sm:$0xff] %v140
        %v142 = vld [vmem:[%s36 + $0x1a0] sm:$0xff]
        %143 = vst [vmem:[%s37 + $0x1a0] sm:$0xff] %v142
        %v144 = vld [vmem:[%s36 + $0x1a8] sm:$0xff]
        %145 = vst [vmem:[%s37 + $0x1a8] sm:$0xff] %v144
        %v146 = vld [vmem:[%s36 + $0x1b0] sm:$0xff]
        %147 = vst [vmem:[%s37 + $0x1b0] sm:$0xff] %v146
        %v148 = vld [vmem:[%s36 + $0x1b8] sm:$0xff]
        %149 = vst [vmem:[%s37 + $0x1b8] sm:$0xff] %v148
        %v150 = vld [vmem:[%s36 + $0x1c0] sm:$0xff]
        %151 = vst [vmem:[%s37 + $0x1c0] sm:$0xff] %v150
        %v152 = vld [vmem:[%s36 + $0x1c8] sm:$0xff]
        %153 = vst [vmem:[%s37 + $0x1c8] sm:$0xff] %v152
        %v154 = vld [vmem:[%s36 + $0x1d0] sm:$0xff]
        %155 = vst [vmem:[%s37 + $0x1d0] sm:$0xff] %v154
        %v156 = vld [vmem:[%s36 + $0x1d8] sm:$0xff]
        %157 = vst [vmem:[%s37 + $0x1d8] sm:$0xff] %v156
        %v158 = vld [vmem:[%s36 + $0x1e0] sm:$0xff]
        %159 = vst [vmem:[%s37 + $0x1e0] sm:$0xff] %v158
        %v160 = vld [vmem:[%s36 + $0x1e8] sm:$0xff]
        %161 = vst [vmem:[%s37 + $0x1e8] sm:$0xff] %v160
        %v162 = vld [vmem:[%s36 + $0x1f0] sm:$0xff]
        %163 = vst [vmem:[%s37 + $0x1f0] sm:$0xff] %v162
        %v164 = vld [vmem:[%s36 + $0x1f8] sm:$0xff]
        %165 = vst [vmem:[%s37 + $0x1f8] sm:$0xff] %v164
        %v166 = vld [vmem:[%s36 + $0x200] sm:$0xff]
        %167 = vst [vmem:[%s37 + $0x200] sm:$0xff] %v166
        %v168 = vld [vmem:[%s36 + $0x208] sm:$0xff]
        %169 = vst [vmem:[%s37 + $0x208] sm:$0xff] %v168
        %v170 = vld [vmem:[%s36 + $0x210] sm:$0xff]
        %171 = vst [vmem:[%s37 + $0x210] sm:$0xff] %v170
        %v172 = vld [vmem:[%s36 + $0x218] sm:$0xff]
        %173 = vst [vmem:[%s37 + $0x218] sm:$0xff] %v172
        %v174 = vld [vmem:[%s36 + $0x220] sm:$0xff]
        %175 = vst [vmem:[%s37 + $0x220] sm:$0xff] %v174
        %v176 = vld [vmem:[%s36 + $0x228] sm:$0xff]
        %177 = vst [vmem:[%s37 + $0x228] sm:$0xff] %v176
        %v178 = vld [vmem:[%s36 + $0x230] sm:$0xff]
        %179 = vst [vmem:[%s37 + $0x230] sm:$0xff] %v178
        %v180 = vld [vmem:[%s36 + $0x238] sm:$0xff]
        %181 = vst [vmem:[%s37 + $0x238] sm:$0xff] %v180
        %v182 = vld [vmem:[%s36 + $0x240] sm:$0xff]
        %183 = vst [vmem:[%s37 + $0x240] sm:$0xff] %v182
        %v184 = vld [vmem:[%s36 + $0x248] sm:$0xff]
        %185 = vst [vmem:[%s37 + $0x248] sm:$0xff] %v184
        %v186 = vld [vmem:[%s36 + $0x250] sm:$0xff]
        %187 = vst [vmem:[%s37 + $0x250] sm:$0xff] %v186
        %v188 = vld [vmem:[%s36 + $0x258] sm:$0xff]
        %189 = vst [vmem:[%s37 + $0x258] sm:$0xff] %v188
        %v190 = vld [vmem:[%s36 + $0x260] sm:$0xff]
        %191 = vst [vmem:[%s37 + $0x260] sm:$0xff] %v190
        %v192 = vld [vmem:[%s36 + $0x268] sm:$0xff]
        %193 = vst [vmem:[%s37 + $0x268] sm:$0xff] %v192
        %v194 = vld [vmem:[%s36 + $0x270] sm:$0xff]
        %195 = vst [vmem:[%s37 + $0x270] sm:$0xff] %v194
        %v196 = vld [vmem:[%s36 + $0x278] sm:$0xff]
        %197 = vst [vmem:[%s37 + $0x278] sm:$0xff] %v196
        %v198 = vld [vmem:[%s36 + $0x280] sm:$0xff]
        %199 = vst [vmem:[%s37 + $0x280] sm:$0xff] %v198
        %v200 = vld [vmem:[%s36 + $0x288] sm:$0xff]
        %201 = vst [vmem:[%s37 + $0x288] sm:$0xff] %v200
        %v202 = vld [vmem:[%s36 + $0x290] sm:$0xff]
        %203 = vst [vmem:[%s37 + $0x290] sm:$0xff] %v202
        %v204 = vld [vmem:[%s36 + $0x298] sm:$0xff]
        %205 = vst [vmem:[%s37 + $0x298] sm:$0xff] %v204
        %v206 = vld [vmem:[%s36 + $0x2a0] sm:$0xff]
        %207 = vst [vmem:[%s37 + $0x2a0] sm:$0xff] %v206
        %v208 = vld [vmem:[%s36 + $0x2a8] sm:$0xff]
        %209 = vst [vmem:[%s37 + $0x2a8] sm:$0xff] %v208
        %v210 = vld [vmem:[%s36 + $0x2b0] sm:$0xff]
        %211 = vst [vmem:[%s37 + $0x2b0] sm:$0xff] %v210
        %v212 = vld [vmem:[%s36 + $0x2b8] sm:$0xff]
        %213 = vst [vmem:[%s37 + $0x2b8] sm:$0xff] %v212
        %v214 = vld [vmem:[%s36 + $0x2c0] sm:$0xff]
        %215 = vst [vmem:[%s37 + $0x2c0] sm:$0xff] %v214
        %v216 = vld [vmem:[%s36 + $0x2c8] sm:$0xff]
        %217 = vst [vmem:[%s37 + $0x2c8] sm:$0xff] %v216
        %v218 = vld [vmem:[%s36 + $0x2d0] sm:$0xff]
        %219 = vst [vmem:[%s37 + $0x2d0] sm:$0xff] %v218
        %v220 = vld [vmem:[%s36 + $0x2d8] sm:$0xff]
        %221 = vst [vmem:[%s37 + $0x2d8] sm:$0xff] %v220
        %v222 = vld [vmem:[%s36 + $0x2e0] sm:$0xff]
        %223 = vst [vmem:[%s37 + $0x2e0] sm:$0xff] %v222
        %v224 = vld [vmem:[%s36 + $0x2e8] sm:$0xff]
        %225 = vst [vmem:[%s37 + $0x2e8] sm:$0xff] %v224
        %v226 = vld [vmem:[%s36 + $0x2f0] sm:$0xff]
        %227 = vst [vmem:[%s37 + $0x2f0] sm:$0xff] %v226
        %v228 = vld [vmem:[%s36 + $0x2f8] sm:$0xff]
        %229 = vst [vmem:[%s37 + $0x2f8] sm:$0xff] %v228
        %v230 = vld [vmem:[%s36 + $0x300] sm:$0xff]
        %231 = vst [vmem:[%s37 + $0x300] sm:$0xff] %v230
        %v232 = vld [vmem:[%s36 + $0x308] sm:$0xff]
        %233 = vst [vmem:[%s37 + $0x308] sm:$0xff] %v232
        %v234 = vld [vmem:[%s36 + $0x310] sm:$0xff]
        %235 = vst [vmem:[%s37 + $0x310] sm:$0xff] %v234
        %v236 = vld [vmem:[%s36 + $0x318] sm:$0xff]
        %237 = vst [vmem:[%s37 + $0x318] sm:$0xff] %v236
        %v238 = vld [vmem:[%s36 + $0x320] sm:$0xff]
        %239 = vst [vmem:[%s37 + $0x320] sm:$0xff] %v238
        %v240 = vld [vmem:[%s36 + $0x328] sm:$0xff]
        %241 = vst [vmem:[%s37 + $0x328] sm:$0xff] %v240
        %v242 = vld [vmem:[%s36 + $0x330] sm:$0xff]
        %243 = vst [vmem:[%s37 + $0x330] sm:$0xff] %v242
        %v244 = vld [vmem:[%s36 + $0x338] sm:$0xff]
        %245 = vst [vmem:[%s37 + $0x338] sm:$0xff] %v244
        %v246 = vld [vmem:[%s36 + $0x340] sm:$0xff]
        %247 = vst [vmem:[%s37 + $0x340] sm:$0xff] %v246
        %v248 = vld [vmem:[%s36 + $0x348] sm:$0xff]
        %249 = vst [vmem:[%s37 + $0x348] sm:$0xff] %v248
        %v250 = vld [vmem:[%s36 + $0x350] sm:$0xff]
        %251 = vst [vmem:[%s37 + $0x350] sm:$0xff] %v250
        %v252 = vld [vmem:[%s36 + $0x358] sm:$0xff]
        %253 = vst [vmem:[%s37 + $0x358] sm:$0xff] %v252
      $region25: #{tpu_custom_call.1} parent=19 // loop_footer
        %s35 = sadd.s32 1, %s31
      $region26: #{tpu_custom_call.1} parent=19 // loop_footer_branch
        %30 = sbr.rel target = $region22
      $region27: #{tpu_custom_call.1} parent=19 // loop_exit
        _
    $region20: #{tpu_custom_call.1} parent=4 // pred_fallthru
      _
    %p254 = pneg %p26
    // Predicated region
    $region28: #{tpu_custom_call.1} parent=4 // pred_check
      _
    $region29: #{tpu_custom_call.1} parent=4 // pred_check_branch
      %256 = sbr.rel (%p26) target = $region31
    $region30: #{tpu_custom_call.1} parent=4 // pred_region
      %s257 = sand.u32 864, 7
    $region31: #{tpu_custom_call.1} parent=4 // pred_fallthru
      _
  $region5: #{tpu_custom_call.1} parent=0 // pred_fallthru
    _
  // Predicated region
  $region6: #{tpu_custom_call.1} parent=0 // pred_check
    %p11 = pneg %p7
  $region7: #{tpu_custom_call.1} parent=0 // pred_check_branch
    %13 = sbr.rel (%p11) target = $region9
  $region8: #{tpu_custom_call.1} parent=0 // pred_region
    %s14 = sshllo.u32 0, 864
    loop: start=0, step=1, limit=1
    $region10: #{tpu_custom_call.1} parent=8 // loop_pre_header
      _
    $region11: #{tpu_custom_call.1} parent=8 // loop_header
      %s16 = sphi 0, %s20
      %p17 = scmp.ge.s32.totalorder %s16, 1
      %s21 = sphi %s0, %s0
      %s22 = sphi %s1, %s1
    $region12: #{tpu_custom_call.1} parent=8 // loop_header_branch
      %19 = sbr.rel (%p17) target = $region16
    $region13: #{tpu_custom_call.1} parent=8 // loop_body
      %v23 = vld [vmem:[%s21] sm:%s14]
      %24 = vst [vmem:[%s22] sm:%s14] %v23
    $region14: #{tpu_custom_call.1} parent=8 // loop_footer
      %s20 = sadd.s32 1, %s16
    $region15: #{tpu_custom_call.1} parent=8 // loop_footer_branch
      %15 = sbr.rel target = $region11
    $region16: #{tpu_custom_call.1} parent=8 // loop_exit
      _
  $region9: #{tpu_custom_call.1} parent=0 // pred_fallthru
    _
  // Predicated region
  $region32: #{tpu_custom_call.1} parent=0 // pred_check
    _
  $region33: #{tpu_custom_call.1} parent=0 // pred_check_branch
    %260 = sbr.rel (0) target = $region35
  $region34: #{tpu_custom_call.1} parent=0 // pred_region
    %261 = vsyncadd [#allocation2], 13824
  $region35: #{tpu_custom_call.1} parent=0 // pred_fallthru
    _
  %s262 = smul.u32 2, 27
  %s263 = smul.u32 %s262, 16
  %s264 = smul.u32 %s263, 1
  %s265 = sshll.u32 %s264, 4
  %266 = dma.done [#allocation2], %s265
  %267 = vsyncmov [#allocation2]
  %s268 = vpop.sfrf %267
  %p269 = scmp.eq.s32.totalorder %s268, 0
  %p270 = pneg %p269
  %272 = shalt.err (%p270)

</llo_original>
